<compile_context>
chip_gen: v6e
topology: v6e:2x2x1
jax: 0.10.0
libtpu: 0.0.40
codegen_flags: <defaults>
</compile_context>

<pallas_src>
import functools

import jax
import jax.numpy as jnp
from jax import lax
from jax.experimental import pallas as pl
from jax.experimental.pallas import tpu as pltpu


def _discretize_kernel(x_ref, w_ref, gamma_ref, beta_ref,
                       id_ref, score_ref, q_ref,
                       *, inv_temperature, ln_eps, mxu_dtype):
    # x_ref:     (TM, D)  input dtype -- tile of tokens (streamed)
    # w_ref:     (V,  D)  mxu_dtype   -- dictionary.weight, single VMEM copy
    # gamma_ref: (1,  D)  f32         -- LayerNorm weight (VMEM resident)
    # beta_ref:  (1,  D)  f32         -- LayerNorm bias   (VMEM resident)
    # id_ref:    (TM, 1)  int32
    # score_ref: (TM, V)  score dtype (bf16 by default)
    # q_ref:     (TM, D)  f32

    # Temperature applied to the small (TM, D) tile, not the (TM, V) logits.
    x = x_ref[...].astype(jnp.float32)
    if inv_temperature != 1.0:
        x = x * inv_temperature
    x = x.astype(mxu_dtype)
    w = w_ref[...]                                                 # (V, D)

    # --- logits = (x/T) @ W^T  (bf16 MXU operands, f32 accumulate) ---
    logits = lax.dot_general(
        x, w,
        dimension_numbers=(((1,), (1,)), ((), ())),                # contract D
        preferred_element_type=jnp.float32)                        # (TM, V)

    # --- argmax over vocab (first occurrence, like torch/jnp) ---
    tm, v = logits.shape
    row_max = jnp.max(logits, axis=-1, keepdims=True)              # (TM, 1)
    iota_v = lax.broadcasted_iota(jnp.int32, (tm, v), 1)
    ids = jnp.min(jnp.where(logits == row_max, iota_v, v),
                  axis=-1, keepdims=True)                          # (TM, 1)
    id_ref[...] = ids.astype(jnp.int32)

    # --- softmax (f32 exp on EUP, approx reciprocal on EUP) ---
    p = jnp.exp(logits - row_max)
    denom = jnp.sum(p, axis=-1, keepdims=True)
    score = (p * pl.reciprocal(denom, approx=True)).astype(score_ref.dtype)
    score_ref[...] = score                                         # bf16 store

    # --- quantized vector = LayerNorm(score @ W) ---
    q = jnp.dot(score.astype(w.dtype), w,
                preferred_element_type=jnp.float32)                # (TM, D) f32
    mean = jnp.mean(q, axis=-1, keepdims=True)
    centered = q - mean
    var = jnp.mean(centered * centered, axis=-1, keepdims=True)
    inv_std = lax.rsqrt(var + ln_eps)
    q_ref[...] = (centered * inv_std * gamma_ref[...]
                  + beta_ref[...]).astype(q_ref.dtype)


def _round_up(a, b):
    return (a + b - 1) // b * b


def _vmem_budget_bytes():
    # Per-core VMEM budget: v5e/v6e have 128 MiB, v7x 64 MiB per TensorCore.
    # Leave ~25% headroom for compiler-internal scratch.
    try:
        cap = int(getattr(pltpu.get_tpu_info(), "vmem_capacity_bytes"))
    except Exception:
        cap = 64 * 2**20            # conservative fallback (v7x per-TC)
    return max(16 * 2**20, (cap * 3) // 4)


def discrete_layer_forward(x, dictionary_weight, ln_gamma, ln_beta, *,
                           temperature=1.0, ln_eps=1e-5, tm=512,
                           mxu_dtype=jnp.bfloat16, score_dtype=jnp.bfloat16):
    """x: [B, S, D]. Returns (id [B,S] int32, score [B,S,V] score_dtype,
    quantized_vector [B,S,D] f32, quantization_loss scalar f32)."""
    B, S, D = x.shape
    V, D2 = dictionary_weight.shape
    assert D == D2
    N = B * S

    x2 = x.reshape(N, D)                           # free metadata reshape;
                                                   # bf16 cast happens in-kernel
    w = dictionary_weight.astype(mxu_dtype)        # (V, D), single copy
    gamma = ln_gamma.reshape(1, D).astype(jnp.float32)
    beta = ln_beta.reshape(1, D).astype(jnp.float32)

    # ---- tile sizing from the per-core VMEM budget ----
    budget = _vmem_budget_bytes()
    mxu_isz = jnp.dtype(mxu_dtype).itemsize
    score_isz = jnp.dtype(score_dtype).itemsize
    x_isz = jnp.dtype(x.dtype).itemsize
    d_pad = _round_up(D, 128)
    v_pad = _round_up(V, 128)
    # Resident (unblocked) arrays: W + LayerNorm params (tile-padded).
    resident = _round_up(V, 16) * d_pad * mxu_isz + 2 * 8 * d_pad * 4
    # Streamed tiles are double-buffered: x, id (lane-padded), score, q.
    per_row = 2 * (d_pad * x_isz + 128 * 4 + v_pad * score_isz + d_pad * 4)
    avail = budget - resident
    tm_budget = max(8, (avail // per_row) // 8 * 8) if avail > 0 else 8
    # TODO(synk): if avail <= 0 (huge V*D), tile V on a second grid axis with an
    # online-softmax accumulator instead of keeping W resident.

    tm = max(8, min(tm, tm_budget, _round_up(N, 8)))
    # v7x megacore: avoid a single-step grid when the rows can be split.
    if pl.cdiv(N, tm) < 2 and N > 8:
        tm = _round_up(pl.cdiv(N, 2), 8)
    grid = (pl.cdiv(N, tm),)

    kernel = functools.partial(_discretize_kernel,
                               inv_temperature=float(1.0 / temperature),
                               ln_eps=float(ln_eps),
                               mxu_dtype=mxu_dtype)

    ids, score, quant = pl.pallas_call(
        kernel,
        out_shape=(
            jax.ShapeDtypeStruct((N, 1), jnp.int32),
            jax.ShapeDtypeStruct((N, V), score_dtype),
            jax.ShapeDtypeStruct((N, D), jnp.float32),
        ),
        grid_spec=pltpu.PrefetchScalarGridSpec(
            num_scalar_prefetch=0,
            grid=grid,
            in_specs=[
                pl.BlockSpec((tm, D), lambda i: (i, 0)),              # x tile
                pl.BlockSpec(memory_space=pltpu.MemorySpace.VMEM),    # W
                pl.BlockSpec(memory_space=pltpu.MemorySpace.VMEM),    # gamma
                pl.BlockSpec(memory_space=pltpu.MemorySpace.VMEM),    # beta
            ],
            out_specs=[
                pl.BlockSpec((tm, 1), lambda i: (i, 0)),
                pl.BlockSpec((tm, V), lambda i: (i, 0)),
                pl.BlockSpec((tm, D), lambda i: (i, 0)),
            ],
        ),
        compiler_params=pltpu.CompilerParams(
            dimension_semantics=("parallel",),
            vmem_limit_bytes=int(budget)),
    )(x2, w, gamma, beta)

    ids = ids.reshape(B, S)
    score = score.reshape(B, S, V)
    quant = quant.reshape(B, S, D)
    quantization_loss = jnp.float32(0.0)
    return ids, score, quant, quantization_loss


def _reference(x, w, gamma, beta, temperature, ln_eps,
               mxu_dtype=jnp.bfloat16):
    # Mirrors the kernel's precision policy: temperature folded into x (f32),
    # bf16 matmul operands, f32 accumulation, f32 softmax / LayerNorm.
    xb = (x.astype(jnp.float32) * (1.0 / temperature)).astype(mxu_dtype)
    wb = w.astype(mxu_dtype)
    logits = jnp.einsum("bsd,vd->bsv", xb, wb,
                        preferred_element_type=jnp.float32)
    ids = jnp.argmax(logits, axis=-1).astype(jnp.int32)
    score = jax.nn.softmax(logits, axis=-1)
    q = jnp.einsum("bsv,vd->bsd", score.astype(mxu_dtype), wb,
                   preferred_element_type=jnp.float32)
    mean = jnp.mean(q, axis=-1, keepdims=True)
    var = jnp.mean((q - mean) ** 2, axis=-1, keepdims=True)
    qn = (q - mean) * lax.rsqrt(var + ln_eps) * gamma + beta
    return logits, ids, score, qn


if __name__ == "__main__":
    B, S, D, V = 2, 8, 32, 512
    temperature = 2.0

    key = jax.random.PRNGKey(0)
    kx, kw = jax.random.split(key)
    x = jax.random.normal(kx, (B, S, D), dtype=jnp.float32)
    # nn.Embedding default init: N(0, 1)
    dictionary_weight = jax.random.normal(kw, (V, D), dtype=jnp.float32)
    # LayerNorm default init: weight=1, bias=0
    ln_gamma = jnp.ones((D,), dtype=jnp.float32)
    ln_beta = jnp.zeros((D,), dtype=jnp.float32)

    ids, score, quant, qloss = discrete_layer_forward(
        x, dictionary_weight, ln_gamma, ln_beta, temperature=temperature)
    jax.block_until_ready((ids, score, quant, qloss))

    ref_logits, ref_ids, ref_score, ref_quant = _reference(
        x, dictionary_weight, ln_gamma, ln_beta, temperature, 1e-5)

    assert ids.shape == (B, S) and ids.dtype == jnp.int32
    assert score.shape == (B, S, V)
    assert quant.shape == (B, S, D)
    assert bool(jnp.all((ids >= 0) & (ids < V)))

    # Argmax: tolerate MXU-vs-XLA / bf16 near-tie flips — the kernel's chosen id
    # must score within a tiny gap of the reference row maximum.
    chosen = jnp.take_along_axis(ref_logits, ids[..., None], axis=-1)[..., 0]
    assert bool(jnp.all(chosen >= ref_logits.max(axis=-1) - 1e-2))

    score_f32 = score.astype(jnp.float32)
    # Softmax rows sum to ~1 (bf16 storage + approx reciprocal).
    assert bool(jnp.all(jnp.abs(jnp.sum(score_f32, axis=-1) - 1.0) < 2e-2))
    # Tolerances cover bf16 score storage (~0.4%), the approx EUP reciprocal,
    # and MXU-kernel vs XLA-einsum logits path differences.
    assert bool(jnp.allclose(score_f32, ref_score, rtol=5e-2, atol=5e-3))
    assert bool(jnp.allclose(quant, ref_quant, rtol=1e-1, atol=1e-1))
    assert float(qloss) == 0.0

    print("KERNEL_OK")
</pallas_src>

<mosaic_0001>
module attributes {stable_mosaic.version = 11 : i64} {
  func.func @_discretize_kernel(%arg0: i32, %arg1: memref<8x32xf32, #tpu.memory_space<vmem>>, %arg2: memref<512x32xbf16, #tpu.memory_space<vmem>>, %arg3: memref<1x32xf32, #tpu.memory_space<vmem>>, %arg4: memref<1x32xf32, #tpu.memory_space<vmem>>, %arg5: memref<8x1xi32, #tpu.memory_space<vmem>>, %arg6: memref<8x512xbf16, #tpu.memory_space<vmem>>, %arg7: memref<8x32xf32, #tpu.memory_space<vmem>>) attributes {dimension_semantics = [#tpu.dimension_semantics<parallel>], iteration_bounds = array<i64: 2>, scalar_prefetch = 0 : i64, scratch_operands = 0 : i64, tpu.core_type = #tpu.core_type<tc>, window_params = [{transform_indices = @transform_0, window_bounds = array<i64: 8, 32>}, {pipeline_mode = #tpu.pipeline_mode<synchronous>, transform_indices = @transform_1, window_bounds = array<i64: 512, 32>}, {pipeline_mode = #tpu.pipeline_mode<synchronous>, transform_indices = @transform_2, window_bounds = array<i64: 1, 32>}, {pipeline_mode = #tpu.pipeline_mode<synchronous>, transform_indices = @transform_3, window_bounds = array<i64: 1, 32>}, {transform_indices = @transform_4, window_bounds = array<i64: 8, 1>}, {transform_indices = @transform_5, window_bounds = array<i64: 8, 512>}, {transform_indices = @transform_6, window_bounds = array<i64: 8, 32>}]} {
    %c0 = arith.constant 0 : index
    %c0_0 = arith.constant 0 : index
    %0 = vector.load %arg1[%c0, %c0_0] : memref<8x32xf32, #tpu.memory_space<vmem>>, vector<8x32xf32>
    %cst = arith.constant 5.000000e-01 : f32
    %1 = vector.broadcast %cst : f32 to vector<8x32xf32>
    %2 = arith.mulf %0, %1 : vector<8x32xf32>
    %3 = arith.truncf %2 : vector<8x32xf32> to vector<8x32xbf16>
    %c0_1 = arith.constant 0 : index
    %c0_2 = arith.constant 0 : index
    %4 = vector.load %arg2[%c0_1, %c0_2] : memref<512x32xbf16, #tpu.memory_space<vmem>>, vector<512x32xbf16>
    %cst_3 = arith.constant dense<0.000000e+00> : vector<8x512xf32>
    %5 = tpu.matmul %3, %4, %cst_3 {dimension_numbers = #tpu.dot_dimension_numbers<[1], [1], [0], [0], [0, 0, 1, 0], [], []>} : vector<8x32xbf16>, vector<512x32xbf16>, vector<8x512xf32> -> vector<8x512xf32>
    %cst_4 = arith.constant dense<0xFF800000> : vector<8xf32>
    %6 = vector.multi_reduction <maximumf>, %5, %cst_4 [1] : vector<8x512xf32> to vector<8xf32>
    %7 = vector.shape_cast %6 : vector<8xf32> to vector<8x1xf32>
    %8 = tpu.iota {dimensions = array<i32: 1>} : vector<8x512xi32>
    %9 = vector.broadcast %7 : vector<8x1xf32> to vector<8x512xf32>
    %10 = arith.cmpf oeq, %5, %9 : vector<8x512xf32>
    %c512_i32 = arith.constant 512 : i32
    %11 = vector.broadcast %c512_i32 : i32 to vector<8x512xi32>
    %12 = arith.select %10, %8, %11 : vector<8x512xi1>, vector<8x512xi32>
    %cst_5 = arith.constant dense<2147483647> : vector<8xi32>
    %13 = vector.multi_reduction <minsi>, %12, %cst_5 [1] : vector<8x512xi32> to vector<8xi32>
    %14 = vector.shape_cast %13 : vector<8xi32> to vector<8x1xi32>
    %c0_6 = arith.constant 0 : index
    %c0_7 = arith.constant 0 : index
    %15 = vector.load %arg5[%c0_6, %c0_7] : memref<8x1xi32, #tpu.memory_space<vmem>>, vector<8x1xi32>
    tpu.vector_store %arg5[%c0_6, %c0_7], %14 {strides = array<i32>} : memref<8x1xi32, #tpu.memory_space<vmem>>, vector<8x1xi32>,
    %16 = vector.broadcast %7 : vector<8x1xf32> to vector<8x512xf32>
    %17 = arith.subf %5, %16 : vector<8x512xf32>
    %18 = math.exp %17 : vector<8x512xf32>
    %cst_8 = arith.constant dense<0.000000e+00> : vector<8xf32>
    %19 = vector.multi_reduction <add>, %18, %cst_8 [1] : vector<8x512xf32> to vector<8xf32>
    %20 = vector.shape_cast %19 : vector<8xf32> to vector<8x1xf32>
    %21 = tpu.reciprocal %20 {approx = true} : vector<8x1xf32> -> vector<8x1xf32>
    %22 = vector.broadcast %21 : vector<8x1xf32> to vector<8x512xf32>
    %23 = arith.mulf %18, %22 : vector<8x512xf32>
    %24 = arith.truncf %23 : vector<8x512xf32> to vector<8x512xbf16>
    %c0_9 = arith.constant 0 : index
    %c0_10 = arith.constant 0 : index
    %25 = vector.load %arg6[%c0_9, %c0_10] : memref<8x512xbf16, #tpu.memory_space<vmem>>, vector<8x512xbf16>
    tpu.vector_store %arg6[%c0_9, %c0_10], %24 {strides = array<i32>} : memref<8x512xbf16, #tpu.memory_space<vmem>>, vector<8x512xbf16>,
    %cst_11 = arith.constant dense<0.000000e+00> : vector<8x32xf32>
    %26 = tpu.matmul %24, %4, %cst_11 {dimension_numbers = #tpu.dot_dimension_numbers<[1], [0], [0], [1], [0, 0, 1, 1], [], []>} : vector<8x512xbf16>, vector<512x32xbf16>, vector<8x32xf32> -> vector<8x32xf32>
    %cst_12 = arith.constant dense<0.000000e+00> : vector<8xf32>
    %27 = vector.multi_reduction <add>, %26, %cst_12 [1] : vector<8x32xf32> to vector<8xf32>
    %28 = vector.shape_cast %27 : vector<8xf32> to vector<8x1xf32>
    %cst_13 = arith.constant 3.200000e+01 : f32
    %29 = vector.broadcast %cst_13 : f32 to vector<8x1xf32>
    %30 = arith.divf %28, %29 : vector<8x1xf32>
    %31 = vector.broadcast %30 : vector<8x1xf32> to vector<8x32xf32>
    %32 = arith.subf %26, %31 : vector<8x32xf32>
    %33 = arith.mulf %32, %32 : vector<8x32xf32>
    %cst_14 = arith.constant dense<0.000000e+00> : vector<8xf32>
    %34 = vector.multi_reduction <add>, %33, %cst_14 [1] : vector<8x32xf32> to vector<8xf32>
    %35 = vector.shape_cast %34 : vector<8xf32> to vector<8x1xf32>
    %cst_15 = arith.constant 3.200000e+01 : f32
    %36 = vector.broadcast %cst_15 : f32 to vector<8x1xf32>
    %37 = arith.divf %35, %36 : vector<8x1xf32>
    %cst_16 = arith.constant 9.99999974E-6 : f32
    %38 = vector.broadcast %cst_16 : f32 to vector<8x1xf32>
    %39 = arith.addf %37, %38 : vector<8x1xf32>
    %40 = math.rsqrt %39 : vector<8x1xf32>
    %41 = vector.broadcast %40 : vector<8x1xf32> to vector<8x32xf32>
    %42 = arith.mulf %32, %41 : vector<8x32xf32>
    %c0_17 = arith.constant 0 : index
    %c0_18 = arith.constant 0 : index
    %43 = vector.load %arg3[%c0_17, %c0_18] : memref<1x32xf32, #tpu.memory_space<vmem>>, vector<1x32xf32>
    %44 = vector.broadcast %43 : vector<1x32xf32> to vector<8x32xf32>
    %45 = arith.mulf %42, %44 : vector<8x32xf32>
    %c0_19 = arith.constant 0 : index
    %c0_20 = arith.constant 0 : index
    %46 = vector.load %arg4[%c0_19, %c0_20] : memref<1x32xf32, #tpu.memory_space<vmem>>, vector<1x32xf32>
    %47 = vector.broadcast %46 : vector<1x32xf32> to vector<8x32xf32>
    %48 = arith.addf %45, %47 : vector<8x32xf32>
    %c0_21 = arith.constant 0 : index
    %c0_22 = arith.constant 0 : index
    %49 = vector.load %arg7[%c0_21, %c0_22] : memref<8x32xf32, #tpu.memory_space<vmem>>, vector<8x32xf32>
    tpu.vector_store %arg7[%c0_21, %c0_22], %48 {strides = array<i32>} : memref<8x32xf32, #tpu.memory_space<vmem>>, vector<8x32xf32>,
    return
  }
  func.func @transform_0(%arg0: i32) -> (i32, i32) {
    %c0_i32 = arith.constant 0 : i32
    %c0_i32_0 = arith.constant 0 : i32
    return %arg0, %c0_i32 : i32, i32
  }
  func.func @transform_1(%arg0: i32) -> (i32, i32) {
    %c0_i32 = arith.constant 0 : i32
    %c0_i32_0 = arith.constant 0 : i32
    %c0_i32_1 = arith.constant 0 : i32
    return %c0_i32, %c0_i32_0 : i32, i32
  }
  func.func @transform_2(%arg0: i32) -> (i32, i32) {
    %c0_i32 = arith.constant 0 : i32
    %c0_i32_0 = arith.constant 0 : i32
    %c0_i32_1 = arith.constant 0 : i32
    return %c0_i32, %c0_i32_0 : i32, i32
  }
  func.func @transform_3(%arg0: i32) -> (i32, i32) {
    %c0_i32 = arith.constant 0 : i32
    %c0_i32_0 = arith.constant 0 : i32
    %c0_i32_1 = arith.constant 0 : i32
    return %c0_i32, %c0_i32_0 : i32, i32
  }
  func.func @transform_4(%arg0: i32) -> (i32, i32) {
    %c0_i32 = arith.constant 0 : i32
    %c0_i32_0 = arith.constant 0 : i32
    return %arg0, %c0_i32 : i32, i32
  }
  func.func @transform_5(%arg0: i32) -> (i32, i32) {
    %c0_i32 = arith.constant 0 : i32
    %c0_i32_0 = arith.constant 0 : i32
    return %arg0, %c0_i32 : i32, i32
  }
  func.func @transform_6(%arg0: i32) -> (i32, i32) {
    %c0_i32 = arith.constant 0 : i32
    %c0_i32_0 = arith.constant 0 : i32
    return %arg0, %c0_i32 : i32, i32
  }
}

</mosaic_0001>

<llo_original>
// kernel: tpu_custom_call.1
$region0: #{tpu_custom_call.1}
  #allocation0 [shape = 'u32[]', space=smem, size = 0x4, offset = 0x4, fixed_abs, tag = 'smem constant byte address 0x4 - core index']
  #allocation1 [shape = 'u32[144,128]{1,0:T(1,128)}', space=vmem, size = 0x12000, scoped, tag = 'internal scratch']
  %s0 = inlined_call_operand.vmem [shape: f32[16,32], index: 0, kind: input, shape index: {}]
  %s1 = inlined_call_operand.vmem [shape: bf16[512,32], index: 1, kind: input, shape index: {}]
  %s2 = inlined_call_operand.vmem [shape: f32[1,32], index: 2, kind: input, shape index: {}]
  %s3 = inlined_call_operand.vmem [shape: f32[1,32], index: 3, kind: input, shape index: {}]
  %s4 = inlined_call_operand.vmem [shape: s32[16,1], index: 4, kind: output, shape index: {0}]
  %s5 = inlined_call_operand.hbm [shape: bf16[16,512], index: 5, kind: output, shape index: {1}]
  %s6 = inlined_call_operand.hbm [shape: f32[16,32], index: 6, kind: output, shape index: {2}]
  %7 = xla_tuple %s4, %s5, %s6
  %s8 = sld [smem:[#allocation0]]
  $region65: #{tpu_custom_call.1} parent=0
    _
  %s10 = ssub.s32 1, %s8
  %s11 = scalar_select 0, %s10, %s8
  $region1: #{tpu_custom_call.1} parent=0
    #allocation2 [shape = 'u8[16384]{0}', space=vmem, size = 0x4000, scoped, tag = 'output window, operand 1']
    #allocation3 [shape = 's32[2]{0}', space=sflag, size = 0x8, scoped, tag = 'scoped memory for tpu_custom_call.1']
    #allocation4 [shape = 'u8[8192]{0}', space=vmem, size = 0x2000, scoped, tag = 'output window, operand 2']
    #allocation5 [shape = 's32[2]{0}', space=sflag, size = 0x8, scoped, tag = 'scoped memory for tpu_custom_call.1']
    %12 = vsyncpa [#allocation3], 0
    %s13 = scalar_lea.sflag [#allocation3], 1
    %14 = vsyncpa %s13, 0
    %15 = vsyncpa [#allocation5], 0
    %s16 = scalar_lea.sflag [#allocation5], 1
    %17 = vsyncpa %s16, 0
    loop: start=0, step=1, limit=4
    $region2: #{tpu_custom_call.1} parent=1 // loop_pre_header
      _
    $region3: #{tpu_custom_call.1} parent=1 // loop_header
      %s19 = sphi 0, %s23
      %p20 = scmp.ge.s32.totalorder %s19, 4
      %s29 = sphi 0, %s31
      %s32 = sphi 0, %s29
      %s33 = sphi 0, %s32
      %s49 = sphi 0, %s33
      %s53 = sphi 0, %s53
      %s55 = sphi 0, %s53
      %s56 = sphi 0, %s55
      %s70 = sphi 0, %s56
      %s74 = sphi 0, %s74
      %s76 = sphi 0, %s74
      %s77 = sphi 0, %s76
      %s91 = sphi 0, %s77
      %s95 = sphi 0, %s95
      %s97 = sphi 0, %s95
      %s98 = sphi 0, %s97
      %s112 = sphi 0, %s98
      %s118 = sphi 0, %s120
      %s121 = sphi 0, %s118
      %s122 = sphi 0, %s121
      %s138 = sphi 0, %s122
      %s144 = sphi 0, %s146
      %s147 = sphi 0, %s144
      %s148 = sphi 0, %s147
      %s164 = sphi 0, %s148
      %s170 = sphi 0, %s172
      %s173 = sphi 0, %s170
      %s174 = sphi 0, %s173
      %s190 = sphi 0, %s174
    $region4: #{tpu_custom_call.1} parent=1 // loop_header_branch
      %22 = sbr.rel (%p20) target = $region8
    $region5: #{tpu_custom_call.1} parent=1 // loop_body
      %s24 = ssub.s32 %s19, 1
      %s25 = ssub.s32 %s19, 2
      %s26 = sadd.s32 %s19, 1
      %s27 = ssub.s32 %s19, %s26
      %p28 = scmp.eq.s32.totalorder %s27, 0
      %s30 = sadd.s32 %s29, 1
      %s31 = scalar_select %p28, %s29, %s30
      %p34 = pneg %p28
      %p35 = scmp.eq.s32.totalorder %s19, 1
      %p36 = por %p34, %p35
      %p37 = scmp.ne.s32.totalorder %s29, %s32
      %p38 = scmp.eq.s32.totalorder %s19, 0
      %p39 = por %p37, %p38
      %p40 = scmp.ne.s32.totalorder %s29, %s32
      %p41 = scmp.eq.s32.totalorder %s24, 1
      %p42 = por %p40, %p41
      %p43 = scmp.ne.s32.totalorder %s32, %s33
      %p44 = scmp.eq.s32.totalorder %s24, 0
      %p45 = por %p43, %p44
      %p46 = scmp.ne.s32.totalorder %s32, %s33
      %p47 = scmp.eq.s32.totalorder %s25, 1
      %p48 = por %p46, %p47
      %p50 = scmp.ne.s32.totalorder %s33, %s49
      %p51 = scmp.eq.s32.totalorder %s25, 0
      %p52 = por %p50, %p51
      %s54 = sadd.s32 %s53, 1
      %p57 = scmp.eq.s32.totalorder %s19, 1
      %p58 = scmp.ne.s32.totalorder %s53, %s55
      %p59 = scmp.eq.s32.totalorder %s19, 0
      %p60 = por %p58, %p59
      %p61 = scmp.ne.s32.totalorder %s53, %s55
      %p62 = scmp.eq.s32.totalorder %s24, 1
      %p63 = por %p61, %p62
      %p64 = scmp.ne.s32.totalorder %s55, %s56
      %p65 = scmp.eq.s32.totalorder %s24, 0
      %p66 = por %p64, %p65
      %p67 = scmp.ne.s32.totalorder %s55, %s56
      %p68 = scmp.eq.s32.totalorder %s25, 1
      %p69 = por %p67, %p68
      %p71 = scmp.ne.s32.totalorder %s56, %s70
      %p72 = scmp.eq.s32.totalorder %s25, 0
      %p73 = por %p71, %p72
      %s75 = sadd.s32 %s74, 1
      %p78 = scmp.eq.s32.totalorder %s19, 1
      %p79 = scmp.ne.s32.totalorder %s74, %s76
      %p80 = scmp.eq.s32.totalorder %s19, 0
      %p81 = por %p79, %p80
      %p82 = scmp.ne.s32.totalorder %s74, %s76
      %p83 = scmp.eq.s32.totalorder %s24, 1
      %p84 = por %p82, %p83
      %p85 = scmp.ne.s32.totalorder %s76, %s77
      %p86 = scmp.eq.s32.totalorder %s24, 0
      %p87 = por %p85, %p86
      %p88 = scmp.ne.s32.totalorder %s76, %s77
      %p89 = scmp.eq.s32.totalorder %s25, 1
      %p90 = por %p88, %p89
      %p92 = scmp.ne.s32.totalorder %s77, %s91
      %p93 = scmp.eq.s32.totalorder %s25, 0
      %p94 = por %p92, %p93
      %s96 = sadd.s32 %s95, 1
      %p99 = scmp.eq.s32.totalorder %s19, 1
      %p100 = scmp.ne.s32.totalorder %s95, %s97
      %p101 = scmp.eq.s32.totalorder %s19, 0
      %p102 = por %p100, %p101
      %p103 = scmp.ne.s32.totalorder %s95, %s97
      %p104 = scmp.eq.s32.totalorder %s24, 1
      %p105 = por %p103, %p104
      %p106 = scmp.ne.s32.totalorder %s97, %s98
      %p107 = scmp.eq.s32.totalorder %s24, 0
      %p108 = por %p106, %p107
      %p109 = scmp.ne.s32.totalorder %s97, %s98
      %p110 = scmp.eq.s32.totalorder %s25, 1
      %p111 = por %p109, %p110
      %p113 = scmp.ne.s32.totalorder %s98, %s112
      %p114 = scmp.eq.s32.totalorder %s25, 0
      %p115 = por %p113, %p114
      %s116 = ssub.s32 %s19, %s26
      %p117 = scmp.eq.s32.totalorder %s116, 0
      %s119 = sadd.s32 %s118, 1
      %s120 = scalar_select %p117, %s118, %s119
      %p123 = pneg %p117
      %p124 = scmp.eq.s32.totalorder %s19, 1
      %p125 = por %p123, %p124
      %p126 = scmp.ne.s32.totalorder %s118, %s121
      %p127 = scmp.eq.s32.totalorder %s19, 0
      %p128 = por %p126, %p127
      %p129 = scmp.ne.s32.totalorder %s118, %s121
      %p130 = scmp.eq.s32.totalorder %s24, 1
      %p131 = por %p129, %p130
      %p132 = scmp.ne.s32.totalorder %s121, %s122
      %p133 = scmp.eq.s32.totalorder %s24, 0
      %p134 = por %p132, %p133
      %p135 = scmp.ne.s32.totalorder %s121, %s122
      %p136 = scmp.eq.s32.totalorder %s25, 1
      %p137 = por %p135, %p136
      %p139 = scmp.ne.s32.totalorder %s122, %s138
      %p140 = scmp.eq.s32.totalorder %s25, 0
      %p141 = por %p139, %p140
      %s142 = ssub.s32 %s19, %s26
      %p143 = scmp.eq.s32.totalorder %s142, 0
      %s145 = sadd.s32 %s144, 1
      %s146 = scalar_select %p143, %s144, %s145
      %p149 = pneg %p143
      %p150 = scmp.eq.s32.totalorder %s19, 1
      %p151 = por %p149, %p150
      %p152 = scmp.ne.s32.totalorder %s144, %s147
      %p153 = scmp.eq.s32.totalorder %s19, 0
      %p154 = por %p152, %p153
      %p155 = scmp.ne.s32.totalorder %s144, %s147
      %p156 = scmp.eq.s32.totalorder %s24, 1
      %p157 = por %p155, %p156
      %p158 = scmp.ne.s32.totalorder %s147, %s148
      %p159 = scmp.eq.s32.totalorder %s24, 0
      %p160 = por %p158, %p159
      %p161 = scmp.ne.s32.totalorder %s147, %s148
      %p162 = scmp.eq.s32.totalorder %s25, 1
      %p163 = por %p161, %p162
      %p165 = scmp.ne.s32.totalorder %s148, %s164
      %p166 = scmp.eq.s32.totalorder %s25, 0
      %p167 = por %p165, %p166
      %s168 = ssub.s32 %s19, %s26
      %p169 = scmp.eq.s32.totalorder %s168, 0
      %s171 = sadd.s32 %s170, 1
      %s172 = scalar_select %p169, %s170, %s171
      %p175 = pneg %p169
      %p176 = scmp.eq.s32.totalorder %s19, 1
      %p177 = por %p175, %p176
      %p178 = scmp.ne.s32.totalorder %s170, %s173
      %p179 = scmp.eq.s32.totalorder %s19, 0
      %p180 = por %p178, %p179
      %p181 = scmp.ne.s32.totalorder %s170, %s173
      %p182 = scmp.eq.s32.totalorder %s24, 1
      %p183 = por %p181, %p182
      %p184 = scmp.ne.s32.totalorder %s173, %s174
      %p185 = scmp.eq.s32.totalorder %s24, 0
      %p186 = por %p184, %p185
      %p187 = scmp.ne.s32.totalorder %s173, %s174
      %p188 = scmp.eq.s32.totalorder %s25, 1
      %p189 = por %p187, %p188
      %p191 = scmp.ne.s32.totalorder %s174, %s190
      %p192 = scmp.eq.s32.totalorder %s25, 0
      %p193 = por %p191, %p192
      %p194 = scmp.le.s32.totalorder 1, %s19
      %p195 = scmp.lt.s32.totalorder %s19, 3
      %p196 = pnand %p194, %p195
      %p197 = pneg %p196
      // Predicated region
      $region9: #{tpu_custom_call.1} parent=5 // pred_check
        _
      $region10: #{tpu_custom_call.1} parent=5 // pred_check_branch
        %199 = sbr.rel (%p196) target = $region12
      $region11: #{tpu_custom_call.1} parent=5 // pred_region
        %s200 = ssub.s32 %s19, 1
        // Predicated region
        $region13: #{tpu_custom_call.1} parent=11 // pred_check
          %p201 = pneg %p66
        $region14: #{tpu_custom_call.1} parent=11 // pred_check_branch
          %203 = sbr.rel (%p201) target = $region16
        $region15: #{tpu_custom_call.1} parent=11 // pred_region
          _
        $region16: #{tpu_custom_call.1} parent=11 // pred_fallthru
          _
        // Predicated region
        $region17: #{tpu_custom_call.1} parent=11 // pred_check
          %p204 = pneg %p87
        $region18: #{tpu_custom_call.1} parent=11 // pred_check_branch
          %206 = sbr.rel (%p204) target = $region20
        $region19: #{tpu_custom_call.1} parent=11 // pred_region
          _
        $region20: #{tpu_custom_call.1} parent=11 // pred_fallthru
          _
        // Predicated region
        $region21: #{tpu_custom_call.1} parent=11 // pred_check
          %p207 = pneg %p108
        $region22: #{tpu_custom_call.1} parent=11 // pred_check_branch
          %209 = sbr.rel (%p207) target = $region24
        $region23: #{tpu_custom_call.1} parent=11 // pred_region
          _
        $region24: #{tpu_custom_call.1} parent=11 // pred_fallthru
          _
      $region12: #{tpu_custom_call.1} parent=5 // pred_fallthru
        _
      %p210 = scmp.lt.s32.totalorder %s19, 2
      // Predicated region
      $region25: #{tpu_custom_call.1} parent=5 // pred_check
        %p211 = pneg %p210
      $region26: #{tpu_custom_call.1} parent=5 // pred_check_branch
        %213 = sbr.rel (%p211) target = $region28
      $region27: #{tpu_custom_call.1} parent=5 // pred_region
        // Predicated region
        $region29: #{tpu_custom_call.1} parent=27 // pred_check
          %p214 = pneg %p39
        $region30: #{tpu_custom_call.1} parent=27 // pred_check_branch
          %216 = sbr.rel (%p214) target = $region32
        $region31: #{tpu_custom_call.1} parent=27 // pred_region
          %p217 = scmp.lt.s32.totalorder %s19, 1
          %s218 = scalar_select %p217, %s19, 1
          %s219 = smul.addr %s218, 8
          %s220 = scalar_lea.vmem %s0, %s219
        $region32: #{tpu_custom_call.1} parent=27 // pred_fallthru
          _
      $region28: #{tpu_custom_call.1} parent=5 // pred_fallthru
        _
      %p221 = scmp.le.s32.totalorder 1, %s19
      %p222 = scmp.lt.s32.totalorder %s19, 3
      %p223 = pnand %p221, %p222
      %p224 = pneg %p223
      // Predicated region
      $region33: #{tpu_custom_call.1} parent=5 // pred_check
        _
      $region34: #{tpu_custom_call.1} parent=5 // pred_check_branch
        %226 = sbr.rel (%p223) target = $region36
      $region35: #{tpu_custom_call.1} parent=5 // pred_region
        %s227 = ssub.s32 %s19, 1
        %p228 = scmp.lt.s32.totalorder %s24, 1
        %s229 = scalar_select %p228, %s24, 1
        %s230 = smul.addr %s229, 8
        %s231 = scalar_lea.vmem %s0, %s230
        %p232 = pneg %p45
        %p233 = pneg %p42
        %p234 = pneg %p66
        %p235 = pneg %p63
        %p236 = pneg %p87
        %p237 = pneg %p84
        %p238 = pneg %p108
        %p239 = pneg %p105
        %p240 = pneg %p134
        %p241 = pneg %p131
        %p242 = scmp.lt.s32.totalorder %s24, 1
        %s243 = scalar_select %p242, %s24, 1
        %s244 = smul.addr %s243, 8
        %s245 = scalar_lea.vmem %s4, %s244
        %p246 = pneg %p160
        %p247 = pneg %p157
        %s248 = sand.u32 %s147, 1
        %s249 = scalar_lea.sflag [#allocation3], %s248
        %s250 = sand.u32 %s147, 1
        %s251 = smul.addr %s250, 16
        %s252 = scalar_lea.vmem [#allocation2], %s251
        %p253 = pneg %p186
        %p254 = pneg %p183
        %s255 = sand.u32 %s173, 1
        %s256 = scalar_lea.sflag [#allocation5], %s255
        %s257 = sand.u32 %s173, 1
        %s258 = smul.addr %s257, 8
        %s259 = scalar_lea.vmem [#allocation4], %s258
        %p260 = scmp.lt.s32.totalorder %s24, 1
        %s261 = scalar_select %p260, %s24, 1
        %s262 = smul.addr %s261, 8
        %s263 = scalar_lea.vmem %s0, %s262
        %p264 = scmp.lt.s32.totalorder %s24, 1
        %s265 = scalar_select %p264, %s24, 1
        %s266 = smul.addr %s265, 8
        %s267 = scalar_lea.vmem %s4, %s266
        %v269 = vld [vmem:[%s263] sm:$0xff]
        %v270 = vmul.f32 %v269, 0.5
        %v271 = vpack.c.bf16 %v270, %v270
        %v272 = vld [vmem:[%s1] sm:$0xf]
        %v273 = vld [vmem:[%s1 + $0x4] sm:$0xf]
        %v274 = vld [vmem:[%s1 + $0x8] sm:$0xf]
        %v275 = vld [vmem:[%s1 + $0xc] sm:$0xf]
        %v276 = vld [vmem:[%s1 + $0x10] sm:$0xf]
        %v277 = vld [vmem:[%s1 + $0x14] sm:$0xf]
        %v278 = vld [vmem:[%s1 + $0x18] sm:$0xf]
        %v279 = vld [vmem:[%s1 + $0x1c] sm:$0xf]
        %v280 = vld [vmem:[%s1 + $0x20] sm:$0xf]
        %v281 = vld [vmem:[%s1 + $0x24] sm:$0xf]
        %v282 = vld [vmem:[%s1 + $0x28] sm:$0xf]
        %v283 = vld [vmem:[%s1 + $0x2c] sm:$0xf]
        %v284 = vld [vmem:[%s1 + $0x30] sm:$0xf]
        %v285 = vld [vmem:[%s1 + $0x34] sm:$0xf]
        %v286 = vld [vmem:[%s1 + $0x38] sm:$0xf]
        %v287 = vld [vmem:[%s1 + $0x3c] sm:$0xf]
        %v288 = vld [vmem:[%s1 + $0x40] sm:$0xf]
        %v289 = vld [vmem:[%s1 + $0x44] sm:$0xf]
        %v290 = vld [vmem:[%s1 + $0x48] sm:$0xf]
        %v291 = vld [vmem:[%s1 + $0x4c] sm:$0xf]
        %v292 = vld [vmem:[%s1 + $0x50] sm:$0xf]
        %v293 = vld [vmem:[%s1 + $0x54] sm:$0xf]
        %v294 = vld [vmem:[%s1 + $0x58] sm:$0xf]
        %v295 = vld [vmem:[%s1 + $0x5c] sm:$0xf]
        %v296 = vld [vmem:[%s1 + $0x60] sm:$0xf]
        %v297 = vld [vmem:[%s1 + $0x64] sm:$0xf]
        %v298 = vld [vmem:[%s1 + $0x68] sm:$0xf]
        %v299 = vld [vmem:[%s1 + $0x6c] sm:$0xf]
        %v300 = vld [vmem:[%s1 + $0x70] sm:$0xf]
        %v301 = vld [vmem:[%s1 + $0x74] sm:$0xf]
        %v302 = vld [vmem:[%s1 + $0x78] sm:$0xf]
        %v303 = vld [vmem:[%s1 + $0x7c] sm:$0xf]
        %v304 = vld [vmem:[%s1 + $0x80] sm:$0xf]
        %v305 = vld [vmem:[%s1 + $0x84] sm:$0xf]
        %v306 = vld [vmem:[%s1 + $0x88] sm:$0xf]
        %v307 = vld [vmem:[%s1 + $0x8c] sm:$0xf]
        %v308 = vld [vmem:[%s1 + $0x90] sm:$0xf]
        %v309 = vld [vmem:[%s1 + $0x94] sm:$0xf]
        %v310 = vld [vmem:[%s1 + $0x98] sm:$0xf]
        %v311 = vld [vmem:[%s1 + $0x9c] sm:$0xf]
        %v312 = vld [vmem:[%s1 + $0xa0] sm:$0xf]
        %v313 = vld [vmem:[%s1 + $0xa4] sm:$0xf]
        %v314 = vld [vmem:[%s1 + $0xa8] sm:$0xf]
        %v315 = vld [vmem:[%s1 + $0xac] sm:$0xf]
        %v316 = vld [vmem:[%s1 + $0xb0] sm:$0xf]
        %v317 = vld [vmem:[%s1 + $0xb4] sm:$0xf]
        %v318 = vld [vmem:[%s1 + $0xb8] sm:$0xf]
        %v319 = vld [vmem:[%s1 + $0xbc] sm:$0xf]
        %v320 = vld [vmem:[%s1 + $0xc0] sm:$0xf]
        %v321 = vld [vmem:[%s1 + $0xc4] sm:$0xf]
        %v322 = vld [vmem:[%s1 + $0xc8] sm:$0xf]
        %v323 = vld [vmem:[%s1 + $0xcc] sm:$0xf]
        %v324 = vld [vmem:[%s1 + $0xd0] sm:$0xf]
        %v325 = vld [vmem:[%s1 + $0xd4] sm:$0xf]
        %v326 = vld [vmem:[%s1 + $0xd8] sm:$0xf]
        %v327 = vld [vmem:[%s1 + $0xdc] sm:$0xf]
        %v328 = vld [vmem:[%s1 + $0xe0] sm:$0xf]
        %v329 = vld [vmem:[%s1 + $0xe4] sm:$0xf]
        %v330 = vld [vmem:[%s1 + $0xe8] sm:$0xf]
        %v331 = vld [vmem:[%s1 + $0xec] sm:$0xf]
        %v332 = vld [vmem:[%s1 + $0xf0] sm:$0xf]
        %v333 = vld [vmem:[%s1 + $0xf4] sm:$0xf]
        %v334 = vld [vmem:[%s1 + $0xf8] sm:$0xf]
        %v335 = vld [vmem:[%s1 + $0xfc] sm:$0xf]
        %v400 = vunpack.c.l.b16 %v272
        %v401 = vunpack.c.l.b16 %v273
        %v402 = vunpack.c.l.b16 %v274
        %v403 = vunpack.c.l.b16 %v275
        %v404 = vunpack.c.l.b16 %v276
        %v405 = vunpack.c.l.b16 %v277
        %v406 = vunpack.c.l.b16 %v278
        %v407 = vunpack.c.l.b16 %v279
        %v408 = vunpack.c.l.b16 %v280
        %v409 = vunpack.c.l.b16 %v281
        %v410 = vunpack.c.l.b16 %v282
        %v411 = vunpack.c.l.b16 %v283
        %v412 = vunpack.c.l.b16 %v284
        %v413 = vunpack.c.l.b16 %v285
        %v414 = vunpack.c.l.b16 %v286
        %v415 = vunpack.c.l.b16 %v287
        %v416 = vunpack.c.l.b16 %v288
        %v417 = vunpack.c.l.b16 %v289
        %v418 = vunpack.c.l.b16 %v290
        %v419 = vunpack.c.l.b16 %v291
        %v420 = vunpack.c.l.b16 %v292
        %v421 = vunpack.c.l.b16 %v293
        %v422 = vunpack.c.l.b16 %v294
        %v423 = vunpack.c.l.b16 %v295
        %v424 = vunpack.c.l.b16 %v296
        %v425 = vunpack.c.l.b16 %v297
        %v426 = vunpack.c.l.b16 %v298
        %v427 = vunpack.c.l.b16 %v299
        %v428 = vunpack.c.l.b16 %v300
        %v429 = vunpack.c.l.b16 %v301
        %v430 = vunpack.c.l.b16 %v302
        %v431 = vunpack.c.l.b16 %v303
        %v432 = vunpack.c.l.b16 %v304
        %v433 = vunpack.c.l.b16 %v305
        %v434 = vunpack.c.l.b16 %v306
        %v435 = vunpack.c.l.b16 %v307
        %v436 = vunpack.c.l.b16 %v308
        %v437 = vunpack.c.l.b16 %v309
        %v438 = vunpack.c.l.b16 %v310
        %v439 = vunpack.c.l.b16 %v311
        %v440 = vunpack.c.l.b16 %v312
        %v441 = vunpack.c.l.b16 %v313
        %v442 = vunpack.c.l.b16 %v314
        %v443 = vunpack.c.l.b16 %v315
        %v444 = vunpack.c.l.b16 %v316
        %v445 = vunpack.c.l.b16 %v317
        %v446 = vunpack.c.l.b16 %v318
        %v447 = vunpack.c.l.b16 %v319
        %v448 = vunpack.c.l.b16 %v320
        %v449 = vunpack.c.l.b16 %v321
        %v450 = vunpack.c.l.b16 %v322
        %v451 = vunpack.c.l.b16 %v323
        %v452 = vunpack.c.l.b16 %v324
        %v453 = vunpack.c.l.b16 %v325
        %v454 = vunpack.c.l.b16 %v326
        %v455 = vunpack.c.l.b16 %v327
        %v456 = vunpack.c.l.b16 %v328
        %v457 = vunpack.c.l.b16 %v329
        %v458 = vunpack.c.l.b16 %v330
        %v459 = vunpack.c.l.b16 %v331
        %v460 = vunpack.c.l.b16 %v332
        %v461 = vunpack.c.l.b16 %v333
        %v462 = vunpack.c.l.b16 %v334
        %v463 = vunpack.c.l.b16 %v335
        %v464 = vpack.c.b16 %v401, %v400
        %v465 = vpack.c.b16 %v403, %v402
        %v466 = vpack.c.b16 %v405, %v404
        %v467 = vpack.c.b16 %v407, %v406
        %v468 = vpack.c.b16 %v409, %v408
        %v469 = vpack.c.b16 %v411, %v410
        %v470 = vpack.c.b16 %v413, %v412
        %v471 = vpack.c.b16 %v415, %v414
        %v472 = vpack.c.b16 %v417, %v416
        %v473 = vpack.c.b16 %v419, %v418
        %v474 = vpack.c.b16 %v421, %v420
        %v475 = vpack.c.b16 %v423, %v422
        %v476 = vpack.c.b16 %v425, %v424
        %v477 = vpack.c.b16 %v427, %v426
        %v478 = vpack.c.b16 %v429, %v428
        %v479 = vpack.c.b16 %v431, %v430
        %v480 = vpack.c.b16 %v433, %v432
        %v481 = vpack.c.b16 %v435, %v434
        %v482 = vpack.c.b16 %v437, %v436
        %v483 = vpack.c.b16 %v439, %v438
        %v484 = vpack.c.b16 %v441, %v440
        %v485 = vpack.c.b16 %v443, %v442
        %v486 = vpack.c.b16 %v445, %v444
        %v487 = vpack.c.b16 %v447, %v446
        %v488 = vpack.c.b16 %v449, %v448
        %v489 = vpack.c.b16 %v451, %v450
        %v490 = vpack.c.b16 %v453, %v452
        %v491 = vpack.c.b16 %v455, %v454
        %v492 = vpack.c.b16 %v457, %v456
        %v493 = vpack.c.b16 %v459, %v458
        %v494 = vpack.c.b16 %v461, %v460
        %v495 = vpack.c.b16 %v463, %v462
        %vm496 = vcmask 261120
        %v498 = vsel %vm496, %v271, 0
        %v501 = vsel %vm496, %v464, 0
        %v504 = vsel %vm496, %v465, 0
        %v507 = vsel %vm496, %v466, 0
        %v510 = vsel %vm496, %v467, 0
        %v513 = vsel %vm496, %v468, 0
        %v516 = vsel %vm496, %v469, 0
        %v519 = vsel %vm496, %v470, 0
        %v522 = vsel %vm496, %v471, 0
        %v525 = vsel %vm496, %v472, 0
        %v528 = vsel %vm496, %v473, 0
        %v531 = vsel %vm496, %v474, 0
        %v534 = vsel %vm496, %v475, 0
        %v537 = vsel %vm496, %v476, 0
        %v540 = vsel %vm496, %v477, 0
        %v543 = vsel %vm496, %v478, 0
        %v546 = vsel %vm496, %v479, 0
        %v549 = vsel %vm496, %v480, 0
        %v552 = vsel %vm496, %v481, 0
        %v555 = vsel %vm496, %v482, 0
        %v558 = vsel %vm496, %v483, 0
        %v561 = vsel %vm496, %v484, 0
        %v564 = vsel %vm496, %v485, 0
        %v567 = vsel %vm496, %v486, 0
        %v570 = vsel %vm496, %v487, 0
        %v573 = vsel %vm496, %v488, 0
        %v576 = vsel %vm496, %v489, 0
        %v579 = vsel %vm496, %v490, 0
        %v582 = vsel %vm496, %v491, 0
        %v585 = vsel %vm496, %v492, 0
        %v588 = vsel %vm496, %v493, 0
        %v591 = vsel %vm496, %v494, 0
        %v594 = vsel %vm496, %v495, 0
        %596 = vmatprep.subr.bf16.mxu0 0
        %597 = vmatpush1.bf16.xpose.msra.mxu0 %v522
        %598 = vmatprep.subr.bf16.mxu0 0
        %599 = vmatpush1.bf16.xpose.msra.mxu0 %v519
        %600 = vmatprep.subr.bf16.mxu0 0
        %601 = vmatpush1.bf16.xpose.msra.mxu0 %v516
        %602 = vmatprep.subr.bf16.mxu0 0
        %603 = vmatpush1.bf16.xpose.msra.mxu0 %v513
        %604 = vmatprep.subr.bf16.mxu0 0
        %605 = vmatpush1.bf16.xpose.msra.mxu0 %v510
        %606 = vmatprep.subr.bf16.mxu0 0
        %607 = vmatpush1.bf16.xpose.msra.mxu0 %v507
        %608 = vmatprep.subr.bf16.mxu0 0
        %609 = vmatpush1.bf16.xpose.msra.mxu0 %v504
        %610 = vmatprep.subr.bf16.mxu0 0
        %611 = vmatpush1.bf16.xpose.msra.mxu0 %v501
        %612 = vmatprep.subr.bf16.mxu0 0
        %613 = vmatpush2.bf16.xpose.msra.mxu0 %v546
        %614 = vmatprep.subr.bf16.mxu0 0
        %615 = vmatpush2.bf16.xpose.msra.mxu0 %v543
        %616 = vmatprep.subr.bf16.mxu0 0
        %617 = vmatpush2.bf16.xpose.msra.mxu0 %v540
        %618 = vmatprep.subr.bf16.mxu0 0
        %619 = vmatpush2.bf16.xpose.msra.mxu0 %v537
        %620 = vmatprep.subr.bf16.mxu0 0
        %621 = vmatpush2.bf16.xpose.msra.mxu0 %v534
        %622 = vmatprep.subr.bf16.mxu0 0
        %623 = vmatpush2.bf16.xpose.msra.mxu0 %v531
        %624 = vmatprep.subr.bf16.mxu0 0
        %625 = vmatpush2.bf16.xpose.msra.mxu0 %v528
        %626 = vmatprep.subr.bf16.mxu0 0
        %627 = vmatpush2.bf16.xpose.msra.mxu0 %v525
        %628 = vmatprep.mubr.bf16.mxu0 0
        %629 = vmatmul.mubr.bf16.gmra.mxu0 %v498
        %v630 = vpop.f32.mrf.mxu0
        %v631 = vadd.f32 0.0, %v630
        %v632 = vpop.f32.mrf.mxu0
        %v633 = vadd.f32 0.0, %v632
        %v634 = vpop.f32.mrf.mxu0
        %v635 = vpop.f32.mrf.mxu0
        %636 = vdwg.mxu0
        %637 = vmatprep.subr.bf16.mxu0 0
        %638 = vmatpush1.bf16.xpose.msra.mxu0 %v570
        %639 = vmatprep.subr.bf16.mxu0 0
        %640 = vmatpush1.bf16.xpose.msra.mxu0 %v567
        %641 = vmatprep.subr.bf16.mxu0 0
        %642 = vmatpush1.bf16.xpose.msra.mxu0 %v564
        %643 = vmatprep.subr.bf16.mxu0 0
        %644 = vmatpush1.bf16.xpose.msra.mxu0 %v561
        %645 = vmatprep.subr.bf16.mxu0 0
        %646 = vmatpush1.bf16.xpose.msra.mxu0 %v558
        %647 = vmatprep.subr.bf16.mxu0 0
        %648 = vmatpush1.bf16.xpose.msra.mxu0 %v555
        %649 = vmatprep.subr.bf16.mxu0 0
        %650 = vmatpush1.bf16.xpose.msra.mxu0 %v552
        %651 = vmatprep.subr.bf16.mxu0 0
        %652 = vmatpush1.bf16.xpose.msra.mxu0 %v549
        %653 = vmatprep.subr.bf16.mxu0 0
        %654 = vmatpush2.bf16.xpose.msra.mxu0 %v594
        %655 = vmatprep.subr.bf16.mxu0 0
        %656 = vmatpush2.bf16.xpose.msra.mxu0 %v591
        %657 = vmatprep.subr.bf16.mxu0 0
        %658 = vmatpush2.bf16.xpose.msra.mxu0 %v588
        %659 = vmatprep.subr.bf16.mxu0 0
        %660 = vmatpush2.bf16.xpose.msra.mxu0 %v585
        %661 = vmatprep.subr.bf16.mxu0 0
        %662 = vmatpush2.bf16.xpose.msra.mxu0 %v582
        %663 = vmatprep.subr.bf16.mxu0 0
        %664 = vmatpush2.bf16.xpose.msra.mxu0 %v579
        %665 = vmatprep.subr.bf16.mxu0 0
        %666 = vmatpush2.bf16.xpose.msra.mxu0 %v576
        %667 = vmatprep.subr.bf16.mxu0 0
        %668 = vmatpush2.bf16.xpose.msra.mxu0 %v573
        %669 = vmatprep.mubr.bf16.mxu0 0
        %670 = vmatmul.mubr.bf16.gmra.mxu0 %v498
        %v671 = vpop.f32.mrf.mxu0
        %v672 = vadd.f32 0.0, %v671
        %v673 = vpop.f32.mrf.mxu0
        %v674 = vadd.f32 0.0, %v673
        %v675 = vpop.f32.mrf.mxu0
        %v676 = vpop.f32.mrf.mxu0
        %677 = vdwg.mxu0
        %v678 = vmax.f32 %v631, %v633
        %v679 = vmax.f32 %v672, %v674
        %v680 = vmax.f32 %v678, %v679
        %681 = vmax.xlane.f32.xlu0 %v680
        %v682 = vpop.xlane.xlu0 %681
        %v683 = vlaneseq
        %v684 = vand.u32 %v683, 127
        %v685 = vadd.s32 %v684, 128
        %v686 = vadd.s32 %v684, 256
        %v687 = vadd.s32 %v684, 384
        %vm688 = vcmp.eq.f32.partialorder %v631, %v682
        %vm689 = vcmp.eq.f32.partialorder %v633, %v682
        %vm690 = vcmp.eq.f32.partialorder %v672, %v682
        %vm691 = vcmp.eq.f32.partialorder %v674, %v682
        %v692 = vsel %vm688, %v684, 512
        %v693 = vsel %vm689, %v685, 512
        %v694 = vsel %vm690, %v686, 512
        %v695 = vsel %vm691, %v687, 512
        %vm696 = vcmp.lt.s32.totalorder %v692, %v693
        %v697 = vsel %vm696, %v692, %v693
        %vm698 = vcmp.lt.s32.totalorder %v694, %v695
        %v699 = vsel %vm698, %v694, %v695
        %vm700 = vcmp.lt.s32.totalorder %v697, %v699
        %v701 = vsel %vm700, %v697, %v699
        %v702 = vand.u32 %v701, 65535
        %v703 = vshra.s32 %v701, 16
        %v704 = vcvt.s32.f32 %v702
        %v705 = vcvt.s32.f32 %v703
        %706 = vmin.xlane.f32.xlu0 %v705
        %v707 = vpop.xlane.xlu0 %706
        %vm708 = vcmp.eq.f32.partialorder %v705, %v707
        %v709 = vsel %vm708, %v704, inf
        %710 = vmin.xlane.f32.xlu0 %v709
        %v711 = vpop.xlane.xlu0 %710
        %v712 = vcvt.f32.s32 %v711
        %v713 = vcvt.f32.s32 %v707
        %v714 = vshll.u32 %v713, 16
        %v715 = vadd.s32 %v714, %v712
        %vm716 = vcmask 7168
        %717 = vst.msk [vmem:[%s267] sm:$0xff] %vm716, %v715
        %v718 = vsub.f32 %v631, %v682
        %v719 = vsub.f32 %v633, %v682
        %v720 = vsub.f32 %v672, %v682
        %v721 = vsub.f32 %v674, %v682
        %v722 = vmul.f32 %v718, 1.442695
        %v723 = vpow.pop %v722
        %v724 = vmul.f32 %v719, 1.442695
        %v725 = vpow.pop %v724
        %v726 = vmul.f32 %v720, 1.442695
        %v727 = vpow.pop %v726
        %v728 = vmul.f32 %v721, 1.442695
        %v729 = vpow.pop %v728
        %v730 = vadd.f32 %v723, %v725
        %v731 = vadd.f32 %v730, %v727
        %v732 = vadd.f32 %v731, %v729
        %733 = vadd.xlane.f32.xlu0 %v732
        %v734 = vpop.xlane.xlu0 %733
        %v735 = vrcp.pop %v734
        %v736 = vmul.f32 %v723, %v735
        %v737 = vmul.f32 %v725, %v735
        %v738 = vmul.f32 %v727, %v735
        %v739 = vmul.f32 %v729, %v735
        %v740 = vpack.c.bf16 %v736, %v736
        %v741 = vpack.c.bf16 %v737, %v737
        %v742 = vpack.c.bf16 %v738, %v738
        %v743 = vpack.c.bf16 %v739, %v739
        %v748 = vunpack.c.l.b16 %v740
        %v749 = vunpack.c.l.b16 %v741
        %v750 = vunpack.c.l.b16 %v742
        %v751 = vunpack.c.l.b16 %v743
        %v752 = vpack.c.b16 %v749, %v748
        %v753 = vpack.c.b16 %v751, %v750
        %756 = vst [vmem:[%s252] sm:$0xff] %v752
        %757 = vst [vmem:[%s252 + $0x8] sm:$0xff] %v753
        %790 = vmatprep.subr.bf16.mxu0 0
        %791 = vmatpush1.bf16.msra.mxu0 %v471
        %792 = vmatprep.subr.bf16.mxu0 0
        %793 = vmatpush1.bf16.msra.mxu0 %v470
        %794 = vmatprep.subr.bf16.mxu0 0
        %795 = vmatpush1.bf16.msra.mxu0 %v469
        %796 = vmatprep.subr.bf16.mxu0 0
        %797 = vmatpush1.bf16.msra.mxu0 %v468
        %798 = vmatprep.subr.bf16.mxu0 0
        %799 = vmatpush1.bf16.msra.mxu0 %v467
        %800 = vmatprep.subr.bf16.mxu0 0
        %801 = vmatpush1.bf16.msra.mxu0 %v466
        %802 = vmatprep.subr.bf16.mxu0 0
        %803 = vmatpush1.bf16.msra.mxu0 %v465
        %804 = vmatprep.subr.bf16.mxu0 0
        %805 = vmatpush1.bf16.msra.mxu0 %v464
        %806 = vmatprep.subr.bf16.mxu0 0
        %807 = vmatpush2.bf16.msra.mxu0 %v479
        %808 = vmatprep.subr.bf16.mxu0 0
        %809 = vmatpush2.bf16.msra.mxu0 %v478
        %810 = vmatprep.subr.bf16.mxu0 0
        %811 = vmatpush2.bf16.msra.mxu0 %v477
        %812 = vmatprep.subr.bf16.mxu0 0
        %813 = vmatpush2.bf16.msra.mxu0 %v476
        %814 = vmatprep.subr.bf16.mxu0 0
        %815 = vmatpush2.bf16.msra.mxu0 %v475
        %816 = vmatprep.subr.bf16.mxu0 0
        %817 = vmatpush2.bf16.msra.mxu0 %v474
        %818 = vmatprep.subr.bf16.mxu0 0
        %819 = vmatpush2.bf16.msra.mxu0 %v473
        %820 = vmatprep.subr.bf16.mxu0 0
        %821 = vmatpush2.bf16.msra.mxu0 %v472
        %822 = vmatprep.mubr.bf16.mxu0 %v741
        %823 = vmatmul.mubr.bf16.gmra.mxu0 %v740
        %v824 = vpop.f32.mrf.mxu0
        %v825 = vadd.f32 0.0, %v824
        %v826 = vpop.f32.mrf.mxu0
        %v827 = vpop.f32.mrf.mxu0
        %v828 = vpop.f32.mrf.mxu0
        %829 = vdwg.mxu0
        %830 = vmatprep.subr.bf16.mxu0 0
        %831 = vmatpush1.bf16.msra.mxu0 %v487
        %832 = vmatprep.subr.bf16.mxu0 0
        %833 = vmatpush1.bf16.msra.mxu0 %v486
        %834 = vmatprep.subr.bf16.mxu0 0
        %835 = vmatpush1.bf16.msra.mxu0 %v485
        %836 = vmatprep.subr.bf16.mxu0 0
        %837 = vmatpush1.bf16.msra.mxu0 %v484
        %838 = vmatprep.subr.bf16.mxu0 0
        %839 = vmatpush1.bf16.msra.mxu0 %v483
        %840 = vmatprep.subr.bf16.mxu0 0
        %841 = vmatpush1.bf16.msra.mxu0 %v482
        %842 = vmatprep.subr.bf16.mxu0 0
        %843 = vmatpush1.bf16.msra.mxu0 %v481
        %844 = vmatprep.subr.bf16.mxu0 0
        %845 = vmatpush1.bf16.msra.mxu0 %v480
        %846 = vmatprep.subr.bf16.mxu0 0
        %847 = vmatpush2.bf16.msra.mxu0 %v495
        %848 = vmatprep.subr.bf16.mxu0 0
        %849 = vmatpush2.bf16.msra.mxu0 %v494
        %850 = vmatprep.subr.bf16.mxu0 0
        %851 = vmatpush2.bf16.msra.mxu0 %v493
        %852 = vmatprep.subr.bf16.mxu0 0
        %853 = vmatpush2.bf16.msra.mxu0 %v492
        %854 = vmatprep.subr.bf16.mxu0 0
        %855 = vmatpush2.bf16.msra.mxu0 %v491
        %856 = vmatprep.subr.bf16.mxu0 0
        %857 = vmatpush2.bf16.msra.mxu0 %v490
        %858 = vmatprep.subr.bf16.mxu0 0
        %859 = vmatpush2.bf16.msra.mxu0 %v489
        %860 = vmatprep.subr.bf16.mxu0 0
        %861 = vmatpush2.bf16.msra.mxu0 %v488
        %862 = vmatprep.mubr.bf16.mxu0 %v743
        %863 = vmatmul.mubr.bf16.gmra.mxu0 %v742
        %v864 = vpop.f32.mrf.mxu0
        %v865 = vadd.f32 %v825, %v864
        %v866 = vpop.f32.mrf.mxu0
        %v867 = vpop.f32.mrf.mxu0
        %v868 = vpop.f32.mrf.mxu0
        %869 = vdwg.mxu0
        %v870 = vsel %vm496, %v865, 0.0
        %871 = vadd.xlane.f32.xlu0 %v870
        %v872 = vpop.xlane.xlu0 %871
        %v873 = vrcp.pop 32.0
        %v874 = vmul.f32 %v872, %v873
        %v875 = vsub.f32 %v865, %v874
        %v876 = vmul.f32 %v875, %v875
        %v877 = vsel %vm496, %v876, 0.0
        %878 = vadd.xlane.f32.xlu0 %v877
        %v879 = vpop.xlane.xlu0 %878
        %v880 = vmul.f32 %v879, %v873
        %v881 = vadd.f32 %v880, 1e-05
        %v882 = vrsqrt.pop %v881
        %v883 = vmul.f32 %v875, %v882
        %v884 = vld [vmem:[%s2] sm:$0x1]
        %v886 = vlaneseq
        %v887 = vshrl.u32 %v886, 7
        %v888 = vsub.s32 0, %v887
        %v889 = vrot.slane %v884, %v888
        %v891 = vmul.f32 %v883, %v889
        %v892 = vld [vmem:[%s3] sm:$0x1]
        %v894 = vlaneseq
        %v895 = vshrl.u32 %v894, 7
        %v896 = vsub.s32 0, %v895
        %v897 = vrot.slane %v892, %v896
        %v899 = vadd.f32 %v891, %v897
        %900 = vst.msk [vmem:[%s259] sm:$0xff] %vm496, %v899
        %p901 = scmp.lt.s32.totalorder %s24, 1
        %s902 = scalar_select %p901, %s24, 1
        %s903 = smul.addr %s902, 8
        %s904 = scalar_lea.vmem %s4, %s903
        %s905 = sand.u32 %s147, 1
        %s906 = scalar_lea.sflag [#allocation3], %s905
        %s907 = sand.u32 %s147, 1
        %s908 = smul.addr %s907, 16
        %s909 = scalar_lea.vmem [#allocation2], %s908
        %s910 = sand.u32 %s173, 1
        %s911 = scalar_lea.sflag [#allocation5], %s910
        %s912 = sand.u32 %s173, 1
        %s913 = smul.addr %s912, 8
        %s914 = scalar_lea.vmem [#allocation4], %s913
        // Predicated region
        $region37: #{tpu_custom_call.1} parent=35 // pred_check
          %p915 = pneg %p131
        $region38: #{tpu_custom_call.1} parent=35 // pred_check_branch
          %917 = sbr.rel (%p915) target = $region40
        $region39: #{tpu_custom_call.1} parent=35 // pred_region
          _
        $region40: #{tpu_custom_call.1} parent=35 // pred_fallthru
          _
        // Predicated region
        $region41: #{tpu_custom_call.1} parent=35 // pred_check
          %p918 = pneg %p157
        $region42: #{tpu_custom_call.1} parent=35 // pred_check_branch
          %920 = sbr.rel (%p918) target = $region44
        $region43: #{tpu_custom_call.1} parent=35 // pred_region
          %s922 = ssub.s32 256, 256
          %923 = vsyncadd %s906, %s922
          %s924 = smul.addr %s24, 4
          %s925 = smul.addr %s924, 64
          %s926 = scalar_lea.hbm %s5, %s925
          %s928 = sshll.u32 %s909, 4
          %s929 = int_to_ptr.vmem [resolvable:$true] %s928
          %931 = dma.vmem_to_hbm [thread:$0]  %s929, 256, %s926, %s906
        $region44: #{tpu_custom_call.1} parent=35 // pred_fallthru
          _
        // Predicated region
        $region45: #{tpu_custom_call.1} parent=35 // pred_check
          %p932 = pneg %p183
        $region46: #{tpu_custom_call.1} parent=35 // pred_check_branch
          %934 = sbr.rel (%p932) target = $region48
        $region47: #{tpu_custom_call.1} parent=35 // pred_region
          %s936 = ssub.s32 128, 128
          %937 = vsyncadd %s911, %s936
          %s938 = smul.addr %s24, 128
          %s939 = scalar_lea.hbm %s6, %s938
          %s941 = sshll.u32 %s914, 4
          %s942 = int_to_ptr.vmem [resolvable:$true] %s941
          %944 = dma.vmem_to_hbm [thread:$0]  %s942, 128, %s939, %s911
        $region48: #{tpu_custom_call.1} parent=35 // pred_fallthru
          _
      $region36: #{tpu_custom_call.1} parent=5 // pred_fallthru
        _
      %p945 = scmp.le.s32.totalorder 2, %s19
      // Predicated region
      $region49: #{tpu_custom_call.1} parent=5 // pred_check
        %p946 = pneg %p945
      $region50: #{tpu_custom_call.1} parent=5 // pred_check_branch
        %948 = sbr.rel (%p946) target = $region52
      $region51: #{tpu_custom_call.1} parent=5 // pred_region
        %s949 = ssub.s32 %s19, 2
        // Predicated region
        $region53: #{tpu_custom_call.1} parent=51 // pred_check
          %p950 = pneg %p137
        $region54: #{tpu_custom_call.1} parent=51 // pred_check_branch
          %952 = sbr.rel (%p950) target = $region56
        $region55: #{tpu_custom_call.1} parent=51 // pred_region
          %p953 = scmp.lt.s32.totalorder %s25, 1
          %s954 = scalar_select %p953, %s25, 1
          %s955 = smul.addr %s954, 8
          %s956 = scalar_lea.vmem %s4, %s955
        $region56: #{tpu_custom_call.1} parent=51 // pred_fallthru
          _
        // Predicated region
        $region57: #{tpu_custom_call.1} parent=51 // pred_check
          %p957 = pneg %p163
        $region58: #{tpu_custom_call.1} parent=51 // pred_check_branch
          %959 = sbr.rel (%p957) target = $region60
        $region59: #{tpu_custom_call.1} parent=51 // pred_region
          %s960 = sand.u32 %s148, 1
          %s961 = scalar_lea.sflag [#allocation3], %s960
          %s962 = sand.u32 %s148, 1
          %s963 = smul.addr %s962, 16
          %s964 = scalar_lea.vmem [#allocation2], %s963
          %965 = dma.done %s961, 256
        $region60: #{tpu_custom_call.1} parent=51 // pred_fallthru
          _
        // Predicated region
        $region61: #{tpu_custom_call.1} parent=51 // pred_check
          %p966 = pneg %p189
        $region62: #{tpu_custom_call.1} parent=51 // pred_check_branch
          %968 = sbr.rel (%p966) target = $region64
        $region63: #{tpu_custom_call.1} parent=51 // pred_region
          %s969 = sand.u32 %s174, 1
          %s970 = scalar_lea.sflag [#allocation5], %s969
          %s971 = sand.u32 %s174, 1
          %s972 = smul.addr %s971, 8
          %s973 = scalar_lea.vmem [#allocation4], %s972
          %974 = dma.done %s970, 128
        $region64: #{tpu_custom_call.1} parent=51 // pred_fallthru
          _
      $region52: #{tpu_custom_call.1} parent=5 // pred_fallthru
        _
    $region6: #{tpu_custom_call.1} parent=1 // loop_footer
      %s23 = sadd.s32 1, %s19
    $region7: #{tpu_custom_call.1} parent=1 // loop_footer_branch
      %18 = sbr.rel target = $region3
    $region8: #{tpu_custom_call.1} parent=1 // loop_exit
      _
    %975 = vsyncpa [#allocation3], 1
    %s976 = scalar_lea.sflag [#allocation3], 1
    %977 = vsyncpa %s976, 1
    %978 = vsyncpa [#allocation5], 1
    %s979 = scalar_lea.sflag [#allocation5], 1
    %980 = vsyncpa %s979, 1

</llo_original>
